<compile_context>
chip_gen: v7x
topology: tpu7x:2x2x1
jax: 0.10.0
libtpu: 0.0.40
codegen_flags: <defaults>
</compile_context>

<pallas_src>
import functools

import jax
import jax.numpy as jnp
from jax import lax
from jax.experimental import pallas as pl
from jax.experimental.pallas import tpu as pltpu


# ---------------------------------------------------------------------------
# Tiling constants
# ---------------------------------------------------------------------------
LANE = 512     # lanes per parameter row-group (multiple of 128)
INNER = 8      # groups reduced per inner fori_loop step (bounded vreg working set)


def _round_up(x, m):
    return ((x + m - 1) // m) * m


def _tpu_config():
    """Per-generation tiling knobs (block size, megacore split, VMEM budget)."""
    kind = ""
    try:
        kind = jax.devices()[0].device_kind.lower()
    except Exception:
        pass
    if "7" in kind:
        # v7x: 2 TCs/chip, ~3.2 TB/s HBM, 64 MiB physical VMEM (32 MiB scoped default).
        # 8 MiB blocks, triple-buffered (24 MiB) + slack.
        return dict(gb_max=512, core_splits=2, vmem_limit=40 << 20, buffers=3)
    if "6" in kind:
        # v6e: 1 TC, ~1.4 TB/s HBM, 128 MiB physical VMEM. 8 MiB blocks, double-buffered.
        return dict(gb_max=512, core_splits=1, vmem_limit=40 << 20, buffers=2)
    if "5" in kind:
        # v5e: 1 TC, ~0.82 TB/s HBM, 16 MiB scoped-VMEM default. 4 MiB blocks.
        return dict(gb_max=256, core_splits=1, vmem_limit=20 << 20, buffers=2)
    # Unknown / older generation: conservative 2 MiB blocks, scoped-VMEM default.
    return dict(gb_max=128, core_splits=1, vmem_limit=None, buffers=2)


# ---------------------------------------------------------------------------
# Fused kernel: BCE-with-logits(mean) + alpha * sum(p^2)
# ---------------------------------------------------------------------------
def _fused_loss_kernel(x_ref, y_ref, p_ref, out_ref, acc_ref, *,
                       inv_count, alpha, inner):
    core = pl.program_id(0)                  # "parallel" axis (megacore split)
    k = pl.program_id(1)                     # "arbitrary" reduction axis
    k_last = pl.num_programs(1) - 1

    @pl.when(k == 0)
    def _init():
        acc_ref[...] = jnp.zeros_like(acc_ref)

    # Hot loop: pure VPU multiply/adds into a vreg-shaped accumulator. The
    # inner fori_loop bounds the per-step working set to `inner` groups so no
    # block-sized elementwise temporary is ever materialized in VMEM.
    n_inner = p_ref.shape[0] // inner

    def body(i, acc):
        start = pl.multiple_of(i * inner, inner)
        blk = p_ref[pl.ds(start, inner)].astype(jnp.float32)   # (inner, sub, LANE)
        return acc + jnp.sum(blk * blk, axis=0)                # (sub, LANE)

    acc_ref[...] = lax.fori_loop(0, n_inner, body, acc_ref[...])

    @pl.when(k == k_last)
    def _finalize():
        # Single cross-lane/sublane reduce + alpha multiply, once per core.
        reg_partial = alpha * jnp.sum(acc_ref[...])
        lane_idx = lax.broadcasted_iota(jnp.int32, out_ref.shape, 1)
        out_ref[...] = jnp.where(lane_idx == 1, reg_partial, 0.0)

        # Data term (numerically stable BCE-with-logits, mean reduction).
        # Only core 0 does this work (no compute-then-mask).
        @pl.when(core == 0)
        def _data():
            x = x_ref[...].astype(jnp.float32)
            y = y_ref[...].astype(jnp.float32)
            per_elem = (jnp.maximum(x, 0.0) - x * y
                        + jnp.log1p(jnp.exp(-jnp.abs(x))))
            data_loss = jnp.sum(per_elem) * inv_count
            out_ref[...] = jnp.where(lane_idx == 0, data_loss, out_ref[...])


# ---------------------------------------------------------------------------
# Parameter slab: flatten + zero-pad to (G, sub, LANE), keeping native dtype
# when it is uniformly bf16/f32 (accumulation in-kernel is always f32).
# NOTE: parameters change every optimizer step, so this build is a per-step
# cost (do NOT cache it across steps).
# ---------------------------------------------------------------------------
def params_to_slab(params):
    dtypes = {jnp.dtype(p.dtype) for p in params}
    if len(dtypes) == 1 and next(iter(dtypes)) in (jnp.dtype(jnp.bfloat16),
                                                   jnp.dtype(jnp.float32)):
        dt = next(iter(dtypes))
    else:
        dt = jnp.dtype(jnp.float32)
    sub = 16 if dt.itemsize == 2 else 8      # bf16 packs (16,128) tiles; f32 (8,128)
    flat = jnp.concatenate([jnp.ravel(p).astype(dt) for p in params])
    group = sub * LANE
    pad = (-flat.shape[0]) % group
    flat = jnp.pad(flat, (0, pad))
    return flat.reshape(-1, sub, LANE)


# ---------------------------------------------------------------------------
# ClassificationLoss.forward equivalent
# ---------------------------------------------------------------------------
def classification_loss(outputs, label, param_slab, reg_alpha=1e-4):
    n, c = outputs.shape
    g, sub, lane = param_slab.shape

    cfg = _tpu_config()
    core_splits = cfg["core_splits"]

    # Block size: whole slab if small, else the per-generation max; always a
    # multiple of INNER so the in-kernel fori_loop tiling is exact.
    gb = min(cfg["gb_max"], _round_up(pl.cdiv(g, core_splits), INNER))
    per_core = pl.cdiv(g, core_splits * gb) * gb
    g_total = per_core * core_splits
    if g_total != g:                                     # zero-pad to exact tiling
        param_slab = jnp.pad(param_slab, ((0, g_total - g), (0, 0), (0, 0)))
    k_steps = per_core // gb

    kernel = functools.partial(_fused_loss_kernel,
                               inv_count=1.0 / float(n * c),
                               alpha=float(reg_alpha),
                               inner=INNER)

    def p_index(cc, k):
        return (cc * k_steps + k, 0, 0)

    # Parameter-slab BlockSpec, triple-buffered on v7x if supported.
    p_spec = None
    if cfg["buffers"] > 2:
        try:
            p_spec = pl.BlockSpec((gb, sub, lane), p_index,
                                  pipeline_mode=pl.Buffered(cfg["buffers"]))
        except Exception:
            p_spec = None
    if p_spec is None:
        p_spec = pl.BlockSpec((gb, sub, lane), p_index)

    cp_kwargs = dict(dimension_semantics=("parallel", "arbitrary"))
    if cfg["vmem_limit"] is not None:
        cp_kwargs["vmem_limit_bytes"] = int(cfg["vmem_limit"])

    partials = pl.pallas_call(
        kernel,
        out_shape=jax.ShapeDtypeStruct((core_splits, 128), jnp.float32),
        grid_spec=pltpu.PrefetchScalarGridSpec(
            num_scalar_prefetch=0,
            grid=(core_splits, k_steps),
            in_specs=[
                # logits / labels: full (tiny) block, resident across the grid
                pl.BlockSpec((n, c), lambda cc, k: (0, 0)),
                pl.BlockSpec((n, c), lambda cc, k: (0, 0)),
                # parameter slab: big blocks, auto multi-buffered DMA
                p_spec,
            ],
            out_specs=pl.BlockSpec((1, 128), lambda cc, k: (cc, 0)),
            scratch_shapes=[pltpu.VMEM((sub, lane), jnp.float32)],
        ),
        compiler_params=pltpu.CompilerParams(**cp_kwargs),
    )(outputs, label, param_slab)

    data_loss = partials[0, 0]
    reg_loss = jnp.sum(partials[:, 1])                   # sum per-core partials
    loss = data_loss + reg_loss
    loss_dict = {
        "data_loss": jax.lax.stop_gradient(data_loss),
        "reg_loss": jax.lax.stop_gradient(reg_loss),
    }
    return loss, loss_dict


# ---------------------------------------------------------------------------
# Example / self-test
# ---------------------------------------------------------------------------
if __name__ == "__main__":
    key = jax.random.PRNGKey(0)
    k_out, k_lab, k_w, k_b = jax.random.split(key, 4)

    N, C = 8, 16                      # batch=8, num_classes=16
    outputs = jax.random.normal(k_out, (N, C), dtype=jnp.float32)      # logits
    label = (jax.random.uniform(k_lab, (N, C)) > 0.5).astype(jnp.float32)

    # Synthetic "model": one linear layer worth of parameters.
    hidden = 32
    weight = jax.random.normal(k_w, (C, hidden), dtype=jnp.float32) * 0.05
    bias = jax.random.normal(k_b, (C,), dtype=jnp.float32) * 0.05
    model_params = [weight, bias]

    reg_alpha = 1e-4
    slab = params_to_slab(model_params)   # rebuilt every step in real training
    loss, loss_dict = classification_loss(outputs, label, slab, reg_alpha)
    loss = jax.block_until_ready(loss)
    jax.block_until_ready(loss_dict)

    # Plain-JAX reference (same math) for a sanity check.
    x = outputs.astype(jnp.float32)
    y = label.astype(jnp.float32)
    ref_data = jnp.mean(jnp.maximum(x, 0.0) - x * y + jnp.log1p(jnp.exp(-jnp.abs(x))))
    ref_reg = reg_alpha * sum(jnp.sum(p.astype(jnp.float32) ** 2) for p in model_params)
    ref = ref_data + ref_reg
    assert jnp.allclose(loss, ref, rtol=1e-4, atol=1e-6), (float(loss), float(ref))

    # Same validity check as the PyTorch module (on concrete host values).
    lv = float(loss)
    if lv < 0 or lv != lv or not bool(jnp.isfinite(loss)):
        raise ValueError(
            "invalid loss! loss: {}, outputs: {} labels: {}".format(
                lv, outputs, label))

    print("KERNEL_OK")
</pallas_src>

<mosaic_0001>
module attributes {stable_mosaic.version = 11 : i64} {
  func.func @_fused_loss_kernel(%arg0: i32, %arg1: i32, %arg2: memref<8x16xf32, #tpu.memory_space<vmem>>, %arg3: memref<8x16xf32, #tpu.memory_space<vmem>>, %arg4: memref<8x8x512xf32, #tpu.memory_space<vmem>>, %arg5: memref<1x128xf32, #tpu.memory_space<vmem>>, %arg6: memref<8x512xf32, #tpu.memory_space<vmem>>) attributes {dimension_semantics = [#tpu.dimension_semantics<parallel>, #tpu.dimension_semantics<arbitrary>], iteration_bounds = array<i64: 1, 1>, scalar_prefetch = 0 : i64, scratch_operands = 1 : i64, tpu.core_type = #tpu.core_type<tc>, window_params = [{pipeline_mode = #tpu.pipeline_mode<synchronous>, transform_indices = @transform_0, window_bounds = array<i64: 8, 16>}, {pipeline_mode = #tpu.pipeline_mode<synchronous>, transform_indices = @transform_1, window_bounds = array<i64: 8, 16>}, {transform_indices = @transform_2, window_bounds = array<i64: 8, 8, 512>}, {transform_indices = @transform_3, window_bounds = array<i64: 1, 128>}]} {
    %c0_i32 = arith.constant 0 : i32
    %0 = arith.cmpi eq, %arg1, %c0_i32 : i32
    %1 = arith.extui %0 : i1 to i32
    %c0_i32_0 = arith.constant 0 : i32
    %2 = arith.cmpi ne, %1, %c0_i32_0 : i32
    scf.if %2 {
      %cst_9 = arith.constant 0.000000e+00 : f32
      %15 = vector.broadcast %cst_9 : f32 to vector<8x512xf32>
      %c0_10 = arith.constant 0 : index
      %c0_11 = arith.constant 0 : index
      %16 = vector.load %arg6[%c0_10, %c0_11] : memref<8x512xf32, #tpu.memory_space<vmem>>, vector<8x512xf32>
      tpu.vector_store %arg6[%c0_10, %c0_11], %15 {strides = array<i32>} : memref<8x512xf32, #tpu.memory_space<vmem>>, vector<8x512xf32>,
    } else {
    }
    %c0 = arith.constant 0 : index
    %c0_1 = arith.constant 0 : index
    %3 = vector.load %arg6[%c0, %c0_1] : memref<8x512xf32, #tpu.memory_space<vmem>>, vector<8x512xf32>
    %c0_i32_2 = arith.constant 0 : i32
    %c8_i32 = arith.constant 8 : i32
    %4 = arith.muli %c0_i32_2, %c8_i32 : i32
    %5 = tpu.assume_multiple %4, 8 : i32
    %6 = arith.index_cast %5 : i32 to index
    %c0_3 = arith.constant 0 : index
    %c0_4 = arith.constant 0 : index
    %7 = vector.load %arg4[%6, %c0_3, %c0_4] : memref<8x8x512xf32, #tpu.memory_space<vmem>>, vector<8x8x512xf32>
    %8 = arith.mulf %7, %7 : vector<8x8x512xf32>
    %cst = arith.constant dense<0.000000e+00> : vector<8x512xf32>
    %9 = vector.multi_reduction <add>, %8, %cst [0] : vector<8x8x512xf32> to vector<8x512xf32>
    %10 = arith.addf %3, %9 : vector<8x512xf32>
    %c1_i32 = arith.constant 1 : i32
    %c0_5 = arith.constant 0 : index
    %c0_6 = arith.constant 0 : index
    %11 = vector.load %arg6[%c0_5, %c0_6] : memref<8x512xf32, #tpu.memory_space<vmem>>, vector<8x512xf32>
    tpu.vector_store %arg6[%c0_5, %c0_6], %10 {strides = array<i32>} : memref<8x512xf32, #tpu.memory_space<vmem>>, vector<8x512xf32>,
    %c0_i32_7 = arith.constant 0 : i32
    %12 = arith.cmpi eq, %arg1, %c0_i32_7 : i32
    %13 = arith.extui %12 : i1 to i32
    %c0_i32_8 = arith.constant 0 : i32
    %14 = arith.cmpi ne, %13, %c0_i32_8 : i32
    scf.if %14 {
      %c0_9 = arith.constant 0 : index
      %c0_10 = arith.constant 0 : index
      %15 = vector.load %arg6[%c0_9, %c0_10] : memref<8x512xf32, #tpu.memory_space<vmem>>, vector<8x512xf32>
      %16 = vector.shape_cast %15 : vector<8x512xf32> to vector<1x8x512xf32>
      %cst_11 = arith.constant dense<0.000000e+00> : vector<1xf32>
      %17 = vector.multi_reduction <add>, %16, %cst_11 [1, 2] : vector<1x8x512xf32> to vector<1xf32>
      %18 = vector.shape_cast %17 : vector<1xf32> to vector<1x1x1xf32>
      %19 = vector.extract %18[0, 0, 0] : f32 from vector<1x1x1xf32>
      %cst_12 = arith.constant 9.99999974E-5 : f32
      %20 = arith.mulf %cst_12, %19 : f32
      %21 = tpu.iota {dimensions = array<i32: 1>} : vector<1x128xi32>
      %c1_i32_13 = arith.constant 1 : i32
      %22 = vector.broadcast %c1_i32_13 : i32 to vector<1x128xi32>
      %23 = arith.cmpi eq, %21, %22 : vector<1x128xi32>
      %cst_14 = arith.constant 0.000000e+00 : f32
      %24 = vector.broadcast %20 : f32 to vector<1x128xf32>
      %25 = vector.broadcast %cst_14 : f32 to vector<1x128xf32>
      %26 = arith.select %23, %24, %25 : vector<1x128xi1>, vector<1x128xf32>
      %c0_15 = arith.constant 0 : index
      %c0_16 = arith.constant 0 : index
      %27 = vector.load %arg5[%c0_15, %c0_16] : memref<1x128xf32, #tpu.memory_space<vmem>>, vector<1x128xf32>
      tpu.vector_store %arg5[%c0_15, %c0_16], %26 {strides = array<i32>} : memref<1x128xf32, #tpu.memory_space<vmem>>, vector<1x128xf32>,
      %c0_i32_17 = arith.constant 0 : i32
      %28 = arith.cmpi eq, %arg0, %c0_i32_17 : i32
      %29 = arith.extui %28 : i1 to i32
      %c0_i32_18 = arith.constant 0 : i32
      %30 = arith.cmpi ne, %29, %c0_i32_18 : i32
      scf.if %30 {
        %c0_19 = arith.constant 0 : index
        %c0_20 = arith.constant 0 : index
        %31 = vector.load %arg2[%c0_19, %c0_20] : memref<8x16xf32, #tpu.memory_space<vmem>>, vector<8x16xf32>
        %c0_21 = arith.constant 0 : index
        %c0_22 = arith.constant 0 : index
        %32 = vector.load %arg3[%c0_21, %c0_22] : memref<8x16xf32, #tpu.memory_space<vmem>>, vector<8x16xf32>
        %cst_23 = arith.constant 0.000000e+00 : f32
        %33 = vector.broadcast %cst_23 : f32 to vector<8x16xf32>
        %34 = arith.maximumf %31, %33 : vector<8x16xf32>
        %35 = arith.mulf %31, %32 : vector<8x16xf32>
        %36 = arith.subf %34, %35 : vector<8x16xf32>
        %37 = math.absf %31 : vector<8x16xf32>
        %cst_24 = arith.constant 0.000000e+00 : f32
        %38 = vector.broadcast %cst_24 : f32 to vector<8x16xf32>
        %39 = arith.subf %38, %37 : vector<8x16xf32>
        %40 = math.exp %39 : vector<8x16xf32>
        %41 = math.log1p %40 : vector<8x16xf32>
        %42 = arith.addf %36, %41 : vector<8x16xf32>
        %43 = vector.shape_cast %42 : vector<8x16xf32> to vector<1x8x16xf32>
        %cst_25 = arith.constant dense<0.000000e+00> : vector<1xf32>
        %44 = vector.multi_reduction <add>, %43, %cst_25 [1, 2] : vector<1x8x16xf32> to vector<1xf32>
        %45 = vector.shape_cast %44 : vector<1xf32> to vector<1x1x1xf32>
        %46 = vector.extract %45[0, 0, 0] : f32 from vector<1x1x1xf32>
        %cst_26 = arith.constant 7.812500e-03 : f32
        %47 = arith.mulf %46, %cst_26 : f32
        %c0_i32_27 = arith.constant 0 : i32
        %48 = vector.broadcast %c0_i32_27 : i32 to vector<1x128xi32>
        %49 = arith.cmpi eq, %21, %48 : vector<1x128xi32>
        %c0_28 = arith.constant 0 : index
        %c0_29 = arith.constant 0 : index
        %50 = vector.load %arg5[%c0_28, %c0_29] : memref<1x128xf32, #tpu.memory_space<vmem>>, vector<1x128xf32>
        %51 = vector.broadcast %47 : f32 to vector<1x128xf32>
        %52 = arith.select %49, %51, %50 : vector<1x128xi1>, vector<1x128xf32>
        %c0_30 = arith.constant 0 : index
        %c0_31 = arith.constant 0 : index
        %53 = vector.load %arg5[%c0_30, %c0_31] : memref<1x128xf32, #tpu.memory_space<vmem>>, vector<1x128xf32>
        tpu.vector_store %arg5[%c0_30, %c0_31], %52 {strides = array<i32>} : memref<1x128xf32, #tpu.memory_space<vmem>>, vector<1x128xf32>,
      } else {
      }
    } else {
    }
    return
  }
  func.func @transform_0(%arg0: i32, %arg1: i32) -> (i32, i32) {
    %c0_i32 = arith.constant 0 : i32
    %c0_i32_0 = arith.constant 0 : i32
    %c0_i32_1 = arith.constant 0 : i32
    return %c0_i32, %c0_i32_0 : i32, i32
  }
  func.func @transform_1(%arg0: i32, %arg1: i32) -> (i32, i32) {
    %c0_i32 = arith.constant 0 : i32
    %c0_i32_0 = arith.constant 0 : i32
    %c0_i32_1 = arith.constant 0 : i32
    return %c0_i32, %c0_i32_0 : i32, i32
  }
  func.func @transform_2(%arg0: i32, %arg1: i32) -> (i32, i32, i32) {
    %c1_i32 = arith.constant 1 : i32
    %0 = arith.muli %arg0, %c1_i32 : i32
    %1 = arith.addi %0, %arg1 : i32
    %c0_i32 = arith.constant 0 : i32
    %c0_i32_0 = arith.constant 0 : i32
    %c0_i32_1 = arith.constant 0 : i32
    return %1, %c0_i32, %c0_i32_0 : i32, i32, i32
  }
  func.func @transform_3(%arg0: i32, %arg1: i32) -> (i32, i32) {
    %c0_i32 = arith.constant 0 : i32
    %c0_i32_0 = arith.constant 0 : i32
    return %arg0, %c0_i32 : i32, i32
  }
}

</mosaic_0001>

<llo_original>
// kernel: tpu_custom_call.1
$region0: #{tpu_custom_call.1}
  #allocation0 [shape = 'u32[]', space=smem, size = 0x4, offset = 0x4, fixed_abs, tag = 'smem constant byte address 0x4 - core index']
  #allocation1 [shape = 'u32[144,128]{1,0:T(1,128)}', space=vmem, size = 0x12000, scoped, tag = 'internal scratch']
  #allocation2 [shape = 'f32[8,512]{1,0:T(8,128)}', space=vmem, size = 0x4000, scoped, tag = 'scratch operand']
  %s0 = inlined_call_operand.hbm [shape: f32[8,16], index: 0, kind: input, shape index: {}]
  %s1 = inlined_call_operand.hbm [shape: f32[8,16], index: 1, kind: input, shape index: {}]
  %s2 = inlined_call_operand.hbm [shape: f32[8,8,512], index: 2, kind: input, shape index: {}]
  %s3 = inlined_call_operand.hbm [shape: f32[1,128], index: 3, kind: output, shape index: {}]
  %s4 = sld [smem:[#allocation0]]
  $region46: #{tpu_custom_call.1} parent=0
    _
  %s6 = ssub.s32 1, %s4
  %s7 = scalar_select 0, %s6, %s4
  $region1: #{tpu_custom_call.1} parent=0
    #allocation3 [shape = 'u8[4096]{0}', space=vmem, size = 0x1000, scoped, tag = 'input window, operand 0, single buffered']
    #allocation4 [shape = 's32[1]{0}', space=sflag, size = 0x4, scoped, tag = 'scoped memory for tpu_custom_call.1']
    #allocation5 [shape = 's32[1]{0}', space=sflag, size = 0x4, scoped, tag = 'scoped memory for tpu_custom_call.1']
    #allocation6 [shape = 'u8[4096]{0}', space=vmem, size = 0x1000, scoped, tag = 'input window, operand 1, single buffered']
    #allocation7 [shape = 's32[1]{0}', space=sflag, size = 0x4, scoped, tag = 'scoped memory for tpu_custom_call.1']
    #allocation8 [shape = 'u8[131072]{0}', space=vmem, size = 0x20000, scoped, tag = 'input window, operand 2, single buffered']
    #allocation9 [shape = 'u8[512]{0}', space=vmem, size = 0x400, scoped, tag = 'output window, operand 0, single buffered']
    %8 = vsyncpa [#allocation4], 0
    %9 = vsyncpa [#allocation7], 0
    %10 = vsyncpa [#allocation5], 0
    // Predicated region
    $region2: #{tpu_custom_call.1} parent=1 // pred_check
      _
    $region3: #{tpu_custom_call.1} parent=1 // pred_check_branch
      %12 = sbr.rel (0) target = $region5
    $region4: #{tpu_custom_call.1} parent=1 // pred_region
      %s14 = ssub.s32 128, 128
      %15 = vsyncadd [#allocation4], %s14
      %s17 = sshll.u32 [#allocation3], 4
      %s18 = int_to_ptr.vmem [resolvable:$true] %s17
      %20 = dma.hbm_to_vmem [thread:$0]  %s0, 128, %s18, [#allocation4]
    $region5: #{tpu_custom_call.1} parent=1 // pred_fallthru
      _
    // Predicated region
    $region6: #{tpu_custom_call.1} parent=1 // pred_check
      _
    $region7: #{tpu_custom_call.1} parent=1 // pred_check_branch
      %22 = sbr.rel (0) target = $region9
    $region8: #{tpu_custom_call.1} parent=1 // pred_region
      %s24 = ssub.s32 128, 128
      %25 = vsyncadd [#allocation7], %s24
      %s27 = sshll.u32 [#allocation6], 4
      %s28 = int_to_ptr.vmem [resolvable:$true] %s27
      %30 = dma.hbm_to_vmem [thread:$0]  %s1, 128, %s28, [#allocation7]
    $region9: #{tpu_custom_call.1} parent=1 // pred_fallthru
      _
    // Predicated region
    $region10: #{tpu_custom_call.1} parent=1 // pred_check
      _
    $region11: #{tpu_custom_call.1} parent=1 // pred_check_branch
      %32 = sbr.rel (0) target = $region13
    $region12: #{tpu_custom_call.1} parent=1 // pred_region
      %s33 = sadd.s32 0, 0
      %s34 = smul.u32 8, %s33
      %s36 = ssub.s32 4096, 4096
      %37 = vsyncadd [#allocation7], %s36
      %s38 = smul.addr %s34, 4
      %s39 = smul.addr %s38, 128
      %s40 = scalar_lea.hbm %s2, %s39
      %s41 = sshll.u32 [#allocation8], 4
      %s42 = int_to_ptr.vmem [resolvable:$true] %s41
      %47 = dma.hbm_to_vmem [thread:$0]  %s40, 4096, %s42, [#allocation7], 512, 512, 32
    $region13: #{tpu_custom_call.1} parent=1 // pred_fallthru
      _
    // Predicated region
    $region14: #{tpu_custom_call.1} parent=1 // pred_check
      _
    $region15: #{tpu_custom_call.1} parent=1 // pred_check_branch
      %49 = sbr.rel (0) target = $region17
    $region16: #{tpu_custom_call.1} parent=1 // pred_region
      %50 = dma.done [#allocation4], 128
    $region17: #{tpu_custom_call.1} parent=1 // pred_fallthru
      _
    // Predicated region
    $region18: #{tpu_custom_call.1} parent=1 // pred_check
      _
    $region19: #{tpu_custom_call.1} parent=1 // pred_check_branch
      %52 = sbr.rel (0) target = $region21
    $region20: #{tpu_custom_call.1} parent=1 // pred_region
      %53 = dma.done [#allocation7], 128
    $region21: #{tpu_custom_call.1} parent=1 // pred_fallthru
      _
    // Predicated region
    $region22: #{tpu_custom_call.1} parent=1 // pred_check
      _
    $region23: #{tpu_custom_call.1} parent=1 // pred_check_branch
      %55 = sbr.rel (0) target = $region25
    $region24: #{tpu_custom_call.1} parent=1 // pred_region
      %56 = dma.done [#allocation7], 4096
    $region25: #{tpu_custom_call.1} parent=1 // pred_fallthru
      _
    %s57 = sadd.s32 0, 0
    %s58 = smul.u32 8, %s57
    %p59 = scmp.eq.s32.totalorder 0, 0
    // Predicated region
    $region26: #{tpu_custom_call.1} parent=1 // pred_check
      %p60 = pneg %p59
    $region27: #{tpu_custom_call.1} parent=1 // pred_check_branch
      %62 = sbr.rel (%p60) target = $region29
    $region28: #{tpu_custom_call.1} parent=1 // pred_region
      %63 = vst [vmem:[#allocation2] sm:$0xff] 0.0
      %64 = vst [vmem:[#allocation2 + $0x8] sm:$0xff] 0.0
      %65 = vst [vmem:[#allocation2 + $0x10] sm:$0xff] 0.0
      %66 = vst [vmem:[#allocation2 + $0x18] sm:$0xff] 0.0
    $region29: #{tpu_custom_call.1} parent=1 // pred_fallthru
      _
    %v67 = vld [vmem:[#allocation2] sm:$0xff]
    %v68 = vld [vmem:[#allocation2 + $0x8] sm:$0xff]
    %v69 = vld [vmem:[#allocation2 + $0x10] sm:$0xff]
    %v70 = vld [vmem:[#allocation2 + $0x18] sm:$0xff]
    %s71 = smul.u32 0, 4
    %s72 = smul.addr %s71, 8
    %s73 = scalar_lea.vmem [#allocation8], %s72
    %v74 = vld [vmem:[%s73] sm:$0xff]
    %v75 = vld [vmem:[%s73 + $0x8] sm:$0xff]
    %v76 = vld [vmem:[%s73 + $0x10] sm:$0xff]
    %v77 = vld [vmem:[%s73 + $0x18] sm:$0xff]
    %v78 = vld [vmem:[%s73 + $0x20] sm:$0xff]
    %v79 = vld [vmem:[%s73 + $0x28] sm:$0xff]
    %v80 = vld [vmem:[%s73 + $0x30] sm:$0xff]
    %v81 = vld [vmem:[%s73 + $0x38] sm:$0xff]
    %v82 = vld [vmem:[%s73 + $0x40] sm:$0xff]
    %v83 = vld [vmem:[%s73 + $0x48] sm:$0xff]
    %v84 = vld [vmem:[%s73 + $0x50] sm:$0xff]
    %v85 = vld [vmem:[%s73 + $0x58] sm:$0xff]
    %v86 = vld [vmem:[%s73 + $0x60] sm:$0xff]
    %v87 = vld [vmem:[%s73 + $0x68] sm:$0xff]
    %v88 = vld [vmem:[%s73 + $0x70] sm:$0xff]
    %v89 = vld [vmem:[%s73 + $0x78] sm:$0xff]
    %v90 = vld [vmem:[%s73 + $0x80] sm:$0xff]
    %v91 = vld [vmem:[%s73 + $0x88] sm:$0xff]
    %v92 = vld [vmem:[%s73 + $0x90] sm:$0xff]
    %v93 = vld [vmem:[%s73 + $0x98] sm:$0xff]
    %v94 = vld [vmem:[%s73 + $0xa0] sm:$0xff]
    %v95 = vld [vmem:[%s73 + $0xa8] sm:$0xff]
    %v96 = vld [vmem:[%s73 + $0xb0] sm:$0xff]
    %v97 = vld [vmem:[%s73 + $0xb8] sm:$0xff]
    %v98 = vld [vmem:[%s73 + $0xc0] sm:$0xff]
    %v99 = vld [vmem:[%s73 + $0xc8] sm:$0xff]
    %v100 = vld [vmem:[%s73 + $0xd0] sm:$0xff]
    %v101 = vld [vmem:[%s73 + $0xd8] sm:$0xff]
    %v102 = vld [vmem:[%s73 + $0xe0] sm:$0xff]
    %v103 = vld [vmem:[%s73 + $0xe8] sm:$0xff]
    %v104 = vld [vmem:[%s73 + $0xf0] sm:$0xff]
    %v105 = vld [vmem:[%s73 + $0xf8] sm:$0xff]
    %v106 = vmul.f32 %v74, %v74
    %v107 = vmul.f32 %v75, %v75
    %v108 = vmul.f32 %v76, %v76
    %v109 = vmul.f32 %v77, %v77
    %v110 = vmul.f32 %v78, %v78
    %v111 = vmul.f32 %v79, %v79
    %v112 = vmul.f32 %v80, %v80
    %v113 = vmul.f32 %v81, %v81
    %v114 = vmul.f32 %v82, %v82
    %v115 = vmul.f32 %v83, %v83
    %v116 = vmul.f32 %v84, %v84
    %v117 = vmul.f32 %v85, %v85
    %v118 = vmul.f32 %v86, %v86
    %v119 = vmul.f32 %v87, %v87
    %v120 = vmul.f32 %v88, %v88
    %v121 = vmul.f32 %v89, %v89
    %v122 = vmul.f32 %v90, %v90
    %v123 = vmul.f32 %v91, %v91
    %v124 = vmul.f32 %v92, %v92
    %v125 = vmul.f32 %v93, %v93
    %v126 = vmul.f32 %v94, %v94
    %v127 = vmul.f32 %v95, %v95
    %v128 = vmul.f32 %v96, %v96
    %v129 = vmul.f32 %v97, %v97
    %v130 = vmul.f32 %v98, %v98
    %v131 = vmul.f32 %v99, %v99
    %v132 = vmul.f32 %v100, %v100
    %v133 = vmul.f32 %v101, %v101
    %v134 = vmul.f32 %v102, %v102
    %v135 = vmul.f32 %v103, %v103
    %v136 = vmul.f32 %v104, %v104
    %v137 = vmul.f32 %v105, %v105
    %v138 = vadd.f32 %v106, %v110
    %v139 = vadd.f32 %v138, %v114
    %v140 = vadd.f32 %v139, %v118
    %v141 = vadd.f32 %v140, %v122
    %v142 = vadd.f32 %v141, %v126
    %v143 = vadd.f32 %v142, %v130
    %v144 = vadd.f32 %v143, %v134
    %v145 = vadd.f32 %v107, %v111
    %v146 = vadd.f32 %v145, %v115
    %v147 = vadd.f32 %v146, %v119
    %v148 = vadd.f32 %v147, %v123
    %v149 = vadd.f32 %v148, %v127
    %v150 = vadd.f32 %v149, %v131
    %v151 = vadd.f32 %v150, %v135
    %v152 = vadd.f32 %v108, %v112
    %v153 = vadd.f32 %v152, %v116
    %v154 = vadd.f32 %v153, %v120
    %v155 = vadd.f32 %v154, %v124
    %v156 = vadd.f32 %v155, %v128
    %v157 = vadd.f32 %v156, %v132
    %v158 = vadd.f32 %v157, %v136
    %v159 = vadd.f32 %v109, %v113
    %v160 = vadd.f32 %v159, %v117
    %v161 = vadd.f32 %v160, %v121
    %v162 = vadd.f32 %v161, %v125
    %v163 = vadd.f32 %v162, %v129
    %v164 = vadd.f32 %v163, %v133
    %v165 = vadd.f32 %v164, %v137
    %v166 = vadd.f32 %v67, %v144
    %v167 = vadd.f32 %v68, %v151
    %v168 = vadd.f32 %v69, %v158
    %v169 = vadd.f32 %v70, %v165
    %170 = vst [vmem:[#allocation2] sm:$0xff] %v166
    %171 = vst [vmem:[#allocation2 + $0x8] sm:$0xff] %v167
    %172 = vst [vmem:[#allocation2 + $0x10] sm:$0xff] %v168
    %173 = vst [vmem:[#allocation2 + $0x18] sm:$0xff] %v169
    // Predicated region
    $region30: #{tpu_custom_call.1} parent=1 // pred_check
      %p174 = pneg %p59
    $region31: #{tpu_custom_call.1} parent=1 // pred_check_branch
      %176 = sbr.rel (%p174) target = $region33
    $region32: #{tpu_custom_call.1} parent=1 // pred_region
      %v177 = vld [vmem:[#allocation2] sm:$0xff]
      %v178 = vld [vmem:[#allocation2 + $0x8] sm:$0xff]
      %v179 = vld [vmem:[#allocation2 + $0x10] sm:$0xff]
      %v180 = vld [vmem:[#allocation2 + $0x18] sm:$0xff]
      %v181 = vadd.f32 %v177, %v178
      %v182 = vadd.f32 %v181, %v179
      %v183 = vadd.f32 %v182, %v180
      %184 = vadd.xlane.f32.xlu0 %v183
      %v185 = vpop.xlane.xlu0 %184
      %v186 = vrot.slane %v185, 4
      %v187 = vadd.f32 %v185, %v186
      %v188 = vrot.slane %v187, 2
      %v189 = vadd.f32 %v187, %v188
      %v190 = vrot.slane %v189, 1
      %v191 = vadd.f32 %v189, %v190
      %s192 = vtos %v191
      %s193 = smul.f32 %s192, 0.0001
      %v194 = vlaneseq
      %v195 = vand.u32 %v194, 127
      %vm196 = vcmp.eq.s32.totalorder %v195, 1
      %v197 = vstv %s193
      %v198 = vsel %vm196, %v197, 0.0
      %199 = vst [vmem:[#allocation9] sm:$0x1] %v198
      %p200 = scmp.eq.s32.totalorder 0, 0
      // Predicated region
      $region34: #{tpu_custom_call.1} parent=32 // pred_check
        %p201 = pneg %p200
      $region35: #{tpu_custom_call.1} parent=32 // pred_check_branch
        %203 = sbr.rel (%p201) target = $region37
      $region36: #{tpu_custom_call.1} parent=32 // pred_region
        %v204 = vld [vmem:[#allocation3] sm:$0xff]
        %v205 = vld [vmem:[#allocation6] sm:$0xff]
        %v206 = vmax.f32 %v204, 0.0
        %v207 = vmul.f32 %v204, %v205
        %v208 = vsub.f32 %v206, %v207
        %v209 = vand.u32 2147483647, %v204
        %v210 = vsub.f32 0.0, %v209
        %v211 = vmul.f32 %v210, 1.442695
        %v212 = vpow.pop %v211
        %v213 = vadd.f32 %v212, 1.0
        %v214 = vlog2.pop %v213
        %v215 = vmul.f32 %v214, 0.6931472
        %v216 = vmul.f32 -0.5, %v212
        %v217 = vadd.f32 %v216, 1.0
        %v218 = vmul.f32 %v217, %v212
        %v219 = vand.u32 2147483647, %v212
        %vm220 = vcmp.lt.f32.partialorder %v219, 0.0004427343
        %v221 = vsel %vm220, %v218, %v215
        %v222 = vadd.f32 %v208, %v221
        %vm223 = vcmask 130048
        %v224 = vsel %vm223, %v222, 0.0
        %225 = vadd.xlane.f32.xlu0 %v224
        %v226 = vpop.xlane.xlu0 %225
        %v227 = vrot.slane %v226, 4
        %v228 = vadd.f32 %v226, %v227
        %v229 = vrot.slane %v228, 2
        %v230 = vadd.f32 %v228, %v229
        %v231 = vrot.slane %v230, 1
        %v232 = vadd.f32 %v230, %v231
        %s233 = vtos %v232
        %s234 = smul.f32 %s233, 0.0078125
        %vm235 = vcmp.eq.s32.totalorder %v195, 0
        %v236 = vld [vmem:[#allocation9] sm:$0x1]
        %v237 = vstv %s234
        %v238 = vsel %vm235, %v237, %v236
        %239 = vst [vmem:[#allocation9] sm:$0x1] %v238
      $region37: #{tpu_custom_call.1} parent=32 // pred_fallthru
        _
    $region33: #{tpu_custom_call.1} parent=1 // pred_fallthru
      _
    // Predicated region
    $region38: #{tpu_custom_call.1} parent=1 // pred_check
      _
    $region39: #{tpu_custom_call.1} parent=1 // pred_check_branch
      %241 = sbr.rel (0) target = $region41
    $region40: #{tpu_custom_call.1} parent=1 // pred_region
      %s243 = ssub.s32 16, 16
      %244 = vsyncadd [#allocation5], %s243
      %s246 = sshll.u32 [#allocation9], 4
      %s247 = int_to_ptr.vmem [resolvable:$true] %s246
      %249 = dma.vmem_to_hbm [thread:$0]  %s247, 16, %s3, [#allocation5]
    $region41: #{tpu_custom_call.1} parent=1 // pred_fallthru
      _
    // Predicated region
    $region42: #{tpu_custom_call.1} parent=1 // pred_check
      _
    $region43: #{tpu_custom_call.1} parent=1 // pred_check_branch
      %251 = sbr.rel (0) target = $region45
    $region44: #{tpu_custom_call.1} parent=1 // pred_region
      %252 = dma.done [#allocation5], 16
    $region45: #{tpu_custom_call.1} parent=1 // pred_fallthru
      _
    %253 = vsyncpa [#allocation4], 1
    %254 = vsyncpa [#allocation7], 1
    %255 = vsyncpa [#allocation5], 1

</llo_original>
